<compile_context>
chip_gen: v7x
topology: tpu7x:2x2x1
jax: 0.10.0
libtpu: 0.0.40
codegen_flags: <defaults>
</compile_context>

<pallas_src>
import functools

import jax
import jax.numpy as jnp
from jax import lax
from jax.experimental import pallas as pl
from jax.experimental.pallas import tpu as pltpu


def _recall_loss_kernel(logits_ref, y_ref, out_ref,
                        tp_ref, sup_ref, cesum_ref,
                        *, ignore_index: int, n_total: float):
    i = pl.program_id(0)

    @pl.when(i == 0)
    def _init():
        tp_ref[...] = jnp.zeros_like(tp_ref)
        sup_ref[...] = jnp.zeros_like(sup_ref)
        cesum_ref[...] = jnp.zeros_like(cesum_ref)

    logits = logits_ref[...].astype(jnp.float32)          # (C, TN); cast after load
    y = y_ref[...]                                        # (1, TN) int32
    c, tn = logits.shape

    valid = y != ignore_index                             # (1, TN)
    valid_f = valid.astype(jnp.float32)
    y_safe = jnp.where(valid, y, 0)

    class_ids = lax.broadcasted_iota(jnp.int32, (c, tn), 0)        # (C, TN)
    onehot = (class_ids == y_safe).astype(jnp.float32) * valid_f   # (C, TN)

    # --- cross entropy, reduction='none' (ignored rows contribute 0) -------
    m = jnp.max(logits, axis=0, keepdims=True)                     # (1, TN)
    lse = jnp.log(jnp.sum(jnp.exp(logits - m), axis=0, keepdims=True)) + m
    g = jnp.sum(onehot * logits, axis=0, keepdims=True)            # logit at target
    ce = (lse - g) * valid_f                                       # (1, TN)

    # --- predictions: first-maximum argmax (torch.argmax semantics) --------
    is_max = logits == m                                           # reuse m
    pred = jnp.min(jnp.where(is_max, class_ids, c), axis=0, keepdims=True)
    correct = (pred == y_safe).astype(jnp.float32) * valid_f       # (1, TN)

    # --- per-class partial sums (lane reductions), accumulated across tiles
    tp_ref[...] += jnp.sum(onehot * correct, axis=1, keepdims=True)   # (C, 1)
    sup_ref[...] += jnp.sum(onehot, axis=1, keepdims=True)            # (C, 1)
    cesum_ref[...] += jnp.sum(onehot * ce, axis=1, keepdims=True)     # (C, 1)

    # --- finalize with GLOBAL counts only -----------------------------------
    @pl.when(i == pl.num_programs(0) - 1)
    def _finalize():
        tp = tp_ref[...]
        sup = sup_ref[...]
        recall = jnp.where(sup > 0.0, tp / jnp.maximum(sup, 1.0), 0.0)
        weight = 1.0 - recall                                         # (C, 1)
        loss = jnp.sum(weight * cesum_ref[...], keepdims=True) / n_total
        out_ref[...] = loss                                           # (1, 1)


def recall_loss(logits, target, *, ignore_index: int = -1, num_classes: int = 5,
                block_n: int = 65536):
    """Pallas implementation of RecallLoss.forward (returns a scalar)."""
    # glue: mirror torch's `try: argmax(target, dim=1) except IndexError: target`
    if target.ndim >= 2:
        y = jnp.argmax(target, axis=1)
    else:
        y = target
    y = y.astype(jnp.int32)   # TODO(synk): could be narrowed to int8 upstream to cut HBM traffic

    n, c = logits.shape
    assert c == num_classes

    # lane-dense layout: classes on sublanes, samples on lanes.
    # Keep the input dtype (bf16 welcome) -- the kernel casts to f32 after load.
    logits_t = jnp.transpose(logits)        # (C, N)
    y_t = y.reshape(1, n)                   # (1, N)

    # tile size: multiple of 128, capped by block_n; pad N up to a tile multiple.
    tn = int(min(block_n, int(pl.cdiv(n, 128)) * 128))
    n_pad = int(pl.cdiv(n, tn)) * tn
    if n_pad != n:
        logits_t = jnp.pad(logits_t, ((0, 0), (0, n_pad - n)))
        y_t = jnp.pad(y_t, ((0, 0), (0, n_pad - n)),
                      constant_values=ignore_index)

    kernel = functools.partial(_recall_loss_kernel,
                               ignore_index=ignore_index, n_total=float(n))
    out = pl.pallas_call(
        kernel,
        out_shape=jax.ShapeDtypeStruct((1, 1), jnp.float32),
        grid_spec=pltpu.PrefetchScalarGridSpec(
            num_scalar_prefetch=0,
            grid=(n_pad // tn,),
            in_specs=[
                pl.BlockSpec((c, tn), lambda i: (0, i)),
                pl.BlockSpec((1, tn), lambda i: (0, i)),
            ],
            out_specs=pl.BlockSpec((1, 1), lambda i: (0, 0)),
            scratch_shapes=[pltpu.VMEM((c, 1), jnp.float32),
                            pltpu.VMEM((c, 1), jnp.float32),
                            pltpu.VMEM((c, 1), jnp.float32)],
        ),
        compiler_params=pltpu.CompilerParams(
            dimension_semantics=("arbitrary",),   # reduction axis with resident scratch
            vmem_limit_bytes=32 * 1024 * 1024,    # safe on v5e/v6e/v7x; tiles are tiny
        ),
    )(logits_t, y_t)
    return out[0, 0]


def recall_loss_ref(logits, target, *, ignore_index: int = -1, num_classes: int = 5):
    """Pure-JAX reference for correctness checking."""
    if target.ndim >= 2:
        y = jnp.argmax(target, axis=1)
    else:
        y = target
    y = y.astype(jnp.int32)
    valid = (y != ignore_index).astype(jnp.float32)
    y_safe = jnp.where(y != ignore_index, y, 0)

    logp = jax.nn.log_softmax(logits.astype(jnp.float32), axis=1)
    ce = -jnp.take_along_axis(logp, y_safe[:, None], axis=1)[:, 0] * valid

    pred = jnp.argmax(logits.astype(jnp.float32), axis=1)
    onehot = jax.nn.one_hot(y_safe, num_classes) * valid[:, None]
    tp = jnp.sum(onehot * (pred == y_safe).astype(jnp.float32)[:, None], axis=0)
    support = jnp.sum(onehot, axis=0)
    recall = jnp.where(support > 0, tp / jnp.maximum(support, 1.0), 0.0)
    weight = 1.0 - recall
    w_y = weight[y_safe] * valid
    return jnp.mean(w_y * ce)


if __name__ == "__main__":
    key = jax.random.PRNGKey(0)
    C = 5

    def make_case(k, n, frac_ignore=0.1, dtype=jnp.float32):
        k1, k2, k3 = jax.random.split(k, 3)
        logits = jax.random.normal(k1, (n, C), dtype=jnp.float32).astype(dtype)
        target = jax.random.randint(k2, (n,), 0, C, dtype=jnp.int32)
        target = jnp.where(jax.random.uniform(k3, (n,)) < frac_ignore, -1, target)
        return logits, target

    k1, k2, k3 = jax.random.split(key, 3)

    # case 1: single tile, N not a multiple of 128 (exercises pad/mask path)
    logits, target = make_case(k1, 200)
    out = jax.block_until_ready(recall_loss(logits, target,
                                            ignore_index=-1, num_classes=C))
    ref = recall_loss_ref(logits, target, ignore_index=-1, num_classes=C)
    assert jnp.allclose(out, ref, atol=1e-5, rtol=1e-5), (out, ref)

    # case 2: multiple grid steps (tiny tile forces 6 tiles) + padding
    logits, target = make_case(k2, 700)
    out = jax.block_until_ready(recall_loss(logits, target, ignore_index=-1,
                                            num_classes=C, block_n=128))
    ref = recall_loss_ref(logits, target, ignore_index=-1, num_classes=C)
    assert jnp.allclose(out, ref, atol=1e-5, rtol=1e-5), (out, ref)

    # case 3: bf16 logits streamed from HBM, f32 math inside the kernel
    logits, target = make_case(k3, 256, dtype=jnp.bfloat16)
    out = jax.block_until_ready(recall_loss(logits, target, ignore_index=-1,
                                            num_classes=C, block_n=128))
    ref = recall_loss_ref(logits, target, ignore_index=-1, num_classes=C)
    assert jnp.allclose(out, ref, atol=1e-5, rtol=1e-5), (out, ref)

    print("KERNEL_OK")
</pallas_src>

<mosaic_0001>
module attributes {stable_mosaic.version = 11 : i64} {
  func.func @_recall_loss_kernel(%arg0: i32, %arg1: memref<5x256xf32, #tpu.memory_space<vmem>>, %arg2: memref<1x256xi32, #tpu.memory_space<vmem>>, %arg3: memref<1x1xf32, #tpu.memory_space<vmem>>, %arg4: memref<5x1xf32, #tpu.memory_space<vmem>>, %arg5: memref<5x1xf32, #tpu.memory_space<vmem>>, %arg6: memref<5x1xf32, #tpu.memory_space<vmem>>) attributes {dimension_semantics = [#tpu.dimension_semantics<arbitrary>], iteration_bounds = array<i64: 1>, scalar_prefetch = 0 : i64, scratch_operands = 3 : i64, tpu.core_type = #tpu.core_type<tc>, window_params = [{transform_indices = @transform_0, window_bounds = array<i64: 5, 256>}, {transform_indices = @transform_1, window_bounds = array<i64: 1, 256>}, {pipeline_mode = #tpu.pipeline_mode<synchronous>, transform_indices = @transform_2, window_bounds = array<i64: 1, 1>}]} {
    %c0_i32 = arith.constant 0 : i32
    %0 = arith.cmpi eq, %arg0, %c0_i32 : i32
    %1 = arith.extui %0 : i1 to i32
    %c0_i32_0 = arith.constant 0 : i32
    %2 = arith.cmpi ne, %1, %c0_i32_0 : i32
    scf.if %2 {
      %cst_25 = arith.constant 0.000000e+00 : f32
      %64 = vector.broadcast %cst_25 : f32 to vector<5x1xf32>
      %c0_26 = arith.constant 0 : index
      %c0_27 = arith.constant 0 : index
      %65 = vector.load %arg4[%c0_26, %c0_27] : memref<5x1xf32, #tpu.memory_space<vmem>>, vector<5x1xf32>
      tpu.vector_store %arg4[%c0_26, %c0_27], %64 {strides = array<i32>} : memref<5x1xf32, #tpu.memory_space<vmem>>, vector<5x1xf32>,
      %cst_28 = arith.constant 0.000000e+00 : f32
      %66 = vector.broadcast %cst_28 : f32 to vector<5x1xf32>
      %c0_29 = arith.constant 0 : index
      %c0_30 = arith.constant 0 : index
      %67 = vector.load %arg5[%c0_29, %c0_30] : memref<5x1xf32, #tpu.memory_space<vmem>>, vector<5x1xf32>
      tpu.vector_store %arg5[%c0_29, %c0_30], %66 {strides = array<i32>} : memref<5x1xf32, #tpu.memory_space<vmem>>, vector<5x1xf32>,
      %cst_31 = arith.constant 0.000000e+00 : f32
      %68 = vector.broadcast %cst_31 : f32 to vector<5x1xf32>
      %c0_32 = arith.constant 0 : index
      %c0_33 = arith.constant 0 : index
      %69 = vector.load %arg6[%c0_32, %c0_33] : memref<5x1xf32, #tpu.memory_space<vmem>>, vector<5x1xf32>
      tpu.vector_store %arg6[%c0_32, %c0_33], %68 {strides = array<i32>} : memref<5x1xf32, #tpu.memory_space<vmem>>, vector<5x1xf32>,
    } else {
    }
    %c0 = arith.constant 0 : index
    %c0_1 = arith.constant 0 : index
    %3 = vector.load %arg1[%c0, %c0_1] : memref<5x256xf32, #tpu.memory_space<vmem>>, vector<5x256xf32>
    %c0_2 = arith.constant 0 : index
    %c0_3 = arith.constant 0 : index
    %4 = vector.load %arg2[%c0_2, %c0_3] : memref<1x256xi32, #tpu.memory_space<vmem>>, vector<1x256xi32>
    %c-1_i32 = arith.constant -1 : i32
    %5 = vector.broadcast %c-1_i32 : i32 to vector<1x256xi32>
    %6 = arith.cmpi ne, %4, %5 : vector<1x256xi32>
    %7 = arith.extui %6 : vector<1x256xi1> to vector<1x256xi32>
    %8 = arith.sitofp %7 : vector<1x256xi32> to vector<1x256xf32>
    %c0_i32_4 = arith.constant 0 : i32
    %9 = vector.broadcast %c0_i32_4 : i32 to vector<1x256xi32>
    %10 = arith.select %6, %4, %9 : vector<1x256xi1>, vector<1x256xi32>
    %11 = tpu.iota {dimensions = array<i32: 0>} : vector<5x256xi32>
    %12 = vector.broadcast %10 : vector<1x256xi32> to vector<5x256xi32>
    %13 = arith.cmpi eq, %11, %12 : vector<5x256xi32>
    %14 = arith.extui %13 : vector<5x256xi1> to vector<5x256xi32>
    %15 = arith.sitofp %14 : vector<5x256xi32> to vector<5x256xf32>
    %16 = vector.broadcast %8 : vector<1x256xf32> to vector<5x256xf32>
    %17 = arith.mulf %15, %16 : vector<5x256xf32>
    %cst = arith.constant dense<0xFF800000> : vector<256xf32>
    %18 = vector.multi_reduction <maximumf>, %3, %cst [0] : vector<5x256xf32> to vector<256xf32>
    %19 = vector.shape_cast %18 : vector<256xf32> to vector<1x256xf32>
    %20 = vector.broadcast %19 : vector<1x256xf32> to vector<5x256xf32>
    %21 = arith.subf %3, %20 : vector<5x256xf32>
    %22 = math.exp %21 : vector<5x256xf32>
    %cst_5 = arith.constant dense<0.000000e+00> : vector<256xf32>
    %23 = vector.multi_reduction <add>, %22, %cst_5 [0] : vector<5x256xf32> to vector<256xf32>
    %24 = vector.shape_cast %23 : vector<256xf32> to vector<1x256xf32>
    %25 = math.log %24 : vector<1x256xf32>
    %26 = arith.addf %25, %19 : vector<1x256xf32>
    %27 = arith.mulf %17, %3 : vector<5x256xf32>
    %cst_6 = arith.constant dense<0.000000e+00> : vector<256xf32>
    %28 = vector.multi_reduction <add>, %27, %cst_6 [0] : vector<5x256xf32> to vector<256xf32>
    %29 = vector.shape_cast %28 : vector<256xf32> to vector<1x256xf32>
    %30 = arith.subf %26, %29 : vector<1x256xf32>
    %31 = arith.mulf %30, %8 : vector<1x256xf32>
    %32 = vector.broadcast %19 : vector<1x256xf32> to vector<5x256xf32>
    %33 = arith.cmpf oeq, %3, %32 : vector<5x256xf32>
    %c5_i32 = arith.constant 5 : i32
    %34 = vector.broadcast %c5_i32 : i32 to vector<5x256xi32>
    %35 = arith.select %33, %11, %34 : vector<5x256xi1>, vector<5x256xi32>
    %cst_7 = arith.constant dense<2147483647> : vector<256xi32>
    %36 = vector.multi_reduction <minsi>, %35, %cst_7 [0] : vector<5x256xi32> to vector<256xi32>
    %37 = vector.shape_cast %36 : vector<256xi32> to vector<1x256xi32>
    %38 = arith.cmpi eq, %37, %10 : vector<1x256xi32>
    %39 = arith.extui %38 : vector<1x256xi1> to vector<1x256xi32>
    %40 = arith.sitofp %39 : vector<1x256xi32> to vector<1x256xf32>
    %41 = arith.mulf %40, %8 : vector<1x256xf32>
    %c0_8 = arith.constant 0 : index
    %c0_9 = arith.constant 0 : index
    %42 = vector.load %arg4[%c0_8, %c0_9] : memref<5x1xf32, #tpu.memory_space<vmem>>, vector<5x1xf32>
    %43 = vector.broadcast %41 : vector<1x256xf32> to vector<5x256xf32>
    %44 = arith.mulf %17, %43 : vector<5x256xf32>
    %cst_10 = arith.constant dense<0.000000e+00> : vector<5xf32>
    %45 = vector.multi_reduction <add>, %44, %cst_10 [1] : vector<5x256xf32> to vector<5xf32>
    %46 = vector.shape_cast %45 : vector<5xf32> to vector<5x1xf32>
    %47 = arith.addf %42, %46 : vector<5x1xf32>
    %c0_11 = arith.constant 0 : index
    %c0_12 = arith.constant 0 : index
    %48 = vector.load %arg4[%c0_11, %c0_12] : memref<5x1xf32, #tpu.memory_space<vmem>>, vector<5x1xf32>
    tpu.vector_store %arg4[%c0_11, %c0_12], %47 {strides = array<i32>} : memref<5x1xf32, #tpu.memory_space<vmem>>, vector<5x1xf32>,
    %c0_13 = arith.constant 0 : index
    %c0_14 = arith.constant 0 : index
    %49 = vector.load %arg5[%c0_13, %c0_14] : memref<5x1xf32, #tpu.memory_space<vmem>>, vector<5x1xf32>
    %cst_15 = arith.constant dense<0.000000e+00> : vector<5xf32>
    %50 = vector.multi_reduction <add>, %17, %cst_15 [1] : vector<5x256xf32> to vector<5xf32>
    %51 = vector.shape_cast %50 : vector<5xf32> to vector<5x1xf32>
    %52 = arith.addf %49, %51 : vector<5x1xf32>
    %c0_16 = arith.constant 0 : index
    %c0_17 = arith.constant 0 : index
    %53 = vector.load %arg5[%c0_16, %c0_17] : memref<5x1xf32, #tpu.memory_space<vmem>>, vector<5x1xf32>
    tpu.vector_store %arg5[%c0_16, %c0_17], %52 {strides = array<i32>} : memref<5x1xf32, #tpu.memory_space<vmem>>, vector<5x1xf32>,
    %c0_18 = arith.constant 0 : index
    %c0_19 = arith.constant 0 : index
    %54 = vector.load %arg6[%c0_18, %c0_19] : memref<5x1xf32, #tpu.memory_space<vmem>>, vector<5x1xf32>
    %55 = vector.broadcast %31 : vector<1x256xf32> to vector<5x256xf32>
    %56 = arith.mulf %17, %55 : vector<5x256xf32>
    %cst_20 = arith.constant dense<0.000000e+00> : vector<5xf32>
    %57 = vector.multi_reduction <add>, %56, %cst_20 [1] : vector<5x256xf32> to vector<5xf32>
    %58 = vector.shape_cast %57 : vector<5xf32> to vector<5x1xf32>
    %59 = arith.addf %54, %58 : vector<5x1xf32>
    %c0_21 = arith.constant 0 : index
    %c0_22 = arith.constant 0 : index
    %60 = vector.load %arg6[%c0_21, %c0_22] : memref<5x1xf32, #tpu.memory_space<vmem>>, vector<5x1xf32>
    tpu.vector_store %arg6[%c0_21, %c0_22], %59 {strides = array<i32>} : memref<5x1xf32, #tpu.memory_space<vmem>>, vector<5x1xf32>,
    %c0_i32_23 = arith.constant 0 : i32
    %61 = arith.cmpi eq, %arg0, %c0_i32_23 : i32
    %62 = arith.extui %61 : i1 to i32
    %c0_i32_24 = arith.constant 0 : i32
    %63 = arith.cmpi ne, %62, %c0_i32_24 : i32
    scf.if %63 {
      %c0_25 = arith.constant 0 : index
      %c0_26 = arith.constant 0 : index
      %64 = vector.load %arg4[%c0_25, %c0_26] : memref<5x1xf32, #tpu.memory_space<vmem>>, vector<5x1xf32>
      %c0_27 = arith.constant 0 : index
      %c0_28 = arith.constant 0 : index
      %65 = vector.load %arg5[%c0_27, %c0_28] : memref<5x1xf32, #tpu.memory_space<vmem>>, vector<5x1xf32>
      %cst_29 = arith.constant 0.000000e+00 : f32
      %66 = vector.broadcast %cst_29 : f32 to vector<5x1xf32>
      %67 = arith.cmpf ogt, %65, %66 : vector<5x1xf32>
      %cst_30 = arith.constant 1.000000e+00 : f32
      %68 = vector.broadcast %cst_30 : f32 to vector<5x1xf32>
      %69 = arith.maximumf %65, %68 : vector<5x1xf32>
      %70 = arith.divf %64, %69 : vector<5x1xf32>
      %cst_31 = arith.constant 0.000000e+00 : f32
      %71 = vector.broadcast %cst_31 : f32 to vector<5x1xf32>
      %72 = arith.select %67, %70, %71 : vector<5x1xi1>, vector<5x1xf32>
      %cst_32 = arith.constant 1.000000e+00 : f32
      %73 = vector.broadcast %cst_32 : f32 to vector<5x1xf32>
      %74 = arith.subf %73, %72 : vector<5x1xf32>
      %c0_33 = arith.constant 0 : index
      %c0_34 = arith.constant 0 : index
      %75 = vector.load %arg6[%c0_33, %c0_34] : memref<5x1xf32, #tpu.memory_space<vmem>>, vector<5x1xf32>
      %76 = arith.mulf %74, %75 : vector<5x1xf32>
      %77 = vector.shape_cast %76 : vector<5x1xf32> to vector<1x5x1xf32>
      %cst_35 = arith.constant dense<0.000000e+00> : vector<1xf32>
      %78 = vector.multi_reduction <add>, %77, %cst_35 [1, 2] : vector<1x5x1xf32> to vector<1xf32>
      %79 = vector.shape_cast %78 : vector<1xf32> to vector<1x1x1xf32>
      %80 = vector.extract %79[0, 0, 0] : f32 from vector<1x1x1xf32>
      %81 = vector.broadcast %80 : f32 to vector<1x1xf32>
      %cst_36 = arith.constant 2.000000e+02 : f32
      %82 = vector.broadcast %cst_36 : f32 to vector<1x1xf32>
      %83 = arith.divf %81, %82 : vector<1x1xf32>
      %c0_37 = arith.constant 0 : index
      %c0_38 = arith.constant 0 : index
      %84 = vector.load %arg3[%c0_37, %c0_38] : memref<1x1xf32, #tpu.memory_space<vmem>>, vector<1x1xf32>
      tpu.vector_store %arg3[%c0_37, %c0_38], %83 {strides = array<i32>} : memref<1x1xf32, #tpu.memory_space<vmem>>, vector<1x1xf32>,
    } else {
    }
    return
  }
  func.func @transform_0(%arg0: i32) -> (i32, i32) {
    %c0_i32 = arith.constant 0 : i32
    %c0_i32_0 = arith.constant 0 : i32
    return %c0_i32, %arg0 : i32, i32
  }
  func.func @transform_1(%arg0: i32) -> (i32, i32) {
    %c0_i32 = arith.constant 0 : i32
    %c0_i32_0 = arith.constant 0 : i32
    return %c0_i32, %arg0 : i32, i32
  }
  func.func @transform_2(%arg0: i32) -> (i32, i32) {
    %c0_i32 = arith.constant 0 : i32
    %c0_i32_0 = arith.constant 0 : i32
    %c0_i32_1 = arith.constant 0 : i32
    return %c0_i32, %c0_i32_0 : i32, i32
  }
}

</mosaic_0001>

<llo_original>
// kernel: tpu_custom_call.1
$region0: #{tpu_custom_call.1}
  #allocation0 [shape = 'u32[]', space=smem, size = 0x4, offset = 0x4, fixed_abs, tag = 'smem constant byte address 0x4 - core index']
  #allocation1 [shape = 'u32[144,128]{1,0:T(1,128)}', space=vmem, size = 0x12000, scoped, tag = 'internal scratch']
  #allocation2 [shape = 'f32[5,1]{1,0:T(8,128)}', space=vmem, size = 0x1000, scoped, tag = 'scratch operand']
  #allocation3 [shape = 'f32[5,1]{1,0:T(8,128)}', space=vmem, size = 0x1000, scoped, tag = 'scratch operand']
  #allocation4 [shape = 'f32[5,1]{1,0:T(8,128)}', space=vmem, size = 0x1000, scoped, tag = 'scratch operand']
  %s0 = inlined_call_operand.hbm [shape: f32[5,256], index: 0, kind: input, shape index: {}]
  %s1 = inlined_call_operand.vmem [shape: s32[1,256], index: 1, kind: input, shape index: {}]
  %s2 = inlined_call_operand.hbm [shape: f32[1,1], index: 2, kind: output, shape index: {}]
  %s3 = sld [smem:[#allocation0]]
  $region30: #{tpu_custom_call.1} parent=0
    _
  %s5 = ssub.s32 1, %s3
  %s6 = scalar_select 0, %s5, %s3
  $region1: #{tpu_custom_call.1} parent=0
    #allocation5 [shape = 'u8[8192]{0}', space=vmem, size = 0x2000, scoped, tag = 'input window, operand 0, single buffered']
    #allocation6 [shape = 's32[1]{0}', space=sflag, size = 0x4, scoped, tag = 'scoped memory for tpu_custom_call.1']
    #allocation7 [shape = 's32[1]{0}', space=sflag, size = 0x4, scoped, tag = 'scoped memory for tpu_custom_call.1']
    #allocation8 [shape = 'u8[512]{0}', space=vmem, size = 0x400, scoped, tag = 'output window, operand 0, single buffered']
    %7 = vsyncpa [#allocation6], 0
    %8 = vsyncpa [#allocation7], 0
    // Predicated region
    $region2: #{tpu_custom_call.1} parent=1 // pred_check
      _
    $region3: #{tpu_custom_call.1} parent=1 // pred_check_branch
      %10 = sbr.rel (0) target = $region5
    $region4: #{tpu_custom_call.1} parent=1 // pred_region
      %s12 = ssub.s32 256, 256
      %13 = vsyncadd [#allocation6], %s12
      %s15 = sshll.u32 [#allocation5], 4
      %s16 = int_to_ptr.vmem [resolvable:$true] %s15
      %18 = dma.hbm_to_vmem [thread:$0]  %s0, 256, %s16, [#allocation6]
    $region5: #{tpu_custom_call.1} parent=1 // pred_fallthru
      _
    // Predicated region
    $region6: #{tpu_custom_call.1} parent=1 // pred_check
      _
    $region7: #{tpu_custom_call.1} parent=1 // pred_check_branch
      %20 = sbr.rel (0) target = $region9
    $region8: #{tpu_custom_call.1} parent=1 // pred_region
      _
    $region9: #{tpu_custom_call.1} parent=1 // pred_fallthru
      _
    // Predicated region
    $region10: #{tpu_custom_call.1} parent=1 // pred_check
      _
    $region11: #{tpu_custom_call.1} parent=1 // pred_check_branch
      %22 = sbr.rel (0) target = $region13
    $region12: #{tpu_custom_call.1} parent=1 // pred_region
      %23 = dma.done [#allocation6], 256
    $region13: #{tpu_custom_call.1} parent=1 // pred_fallthru
      _
    %p24 = scmp.eq.s32.totalorder 0, 0
    // Predicated region
    $region14: #{tpu_custom_call.1} parent=1 // pred_check
      %p25 = pneg %p24
    $region15: #{tpu_custom_call.1} parent=1 // pred_check_branch
      %27 = sbr.rel (%p25) target = $region17
    $region16: #{tpu_custom_call.1} parent=1 // pred_region
      %vm28 = vcmask 4096
      %29 = vst.msk [vmem:[#allocation2] sm:$0x1f] %vm28, 0.0
      %30 = vst.msk [vmem:[#allocation3] sm:$0x1f] %vm28, 0.0
      %31 = vst.msk [vmem:[#allocation4] sm:$0x1f] %vm28, 0.0
    $region17: #{tpu_custom_call.1} parent=1 // pred_fallthru
      _
    %v32 = vld [vmem:[#allocation5] sm:$0x1f]
    %v33 = vld [vmem:[#allocation5 + $0x8] sm:$0x1f]
    %v34 = vld [vmem:[%s1] sm:$0x3]
    %vm35 = vcmp.ne.s32.totalorder %v34, 4294967295
    %v36 = vsel %vm35, 1, 0
    %v37 = vcvt.s32.f32 %v36
    %v38 = vsel %vm35, %v34, 0
    %v39 = vlaneseq
    %v40 = vshrl.u32 %v39, 7
    %v41 = vlaneseq
    %v42 = vshrl.u32 %v41, 7
    %v43 = vsub.s32 0, %v42
    %v44 = vrot.slane %v38, %v43
    %v45 = vlaneseq
    %v46 = vshrl.u32 %v45, 7
    %v47 = vsub.s32 1, %v46
    %v48 = vrot.slane %v38, %v47
    %vm49 = vcmp.eq.s32.totalorder %v40, %v44
    %vm50 = vcmp.eq.s32.totalorder %v40, %v48
    %v51 = vsel %vm49, 1, 0
    %v52 = vsel %vm50, 1, 0
    %v53 = vcvt.s32.f32 %v51
    %v54 = vcvt.s32.f32 %v52
    %v56 = vlaneseq
    %v57 = vshrl.u32 %v56, 7
    %v58 = vsub.s32 0, %v57
    %v59 = vrot.slane %v37, %v58
    %v60 = vlaneseq
    %v61 = vshrl.u32 %v60, 7
    %v62 = vsub.s32 1, %v61
    %v63 = vrot.slane %v37, %v62
    %v66 = vmul.f32 %v53, %v59
    %v67 = vmul.f32 %v54, %v63
    %vm68 = vcmask 1044480
    %v69 = vsel %vm68, %v32, -inf
    %v70 = vrot.slane %v69, 4
    %v71 = vmax.f32 %v69, %v70
    %v72 = vrot.slane %v71, 2
    %v73 = vmax.f32 %v71, %v72
    %v74 = vrot.slane %v73, 1
    %v75 = vmax.f32 %v73, %v74
    %v76 = vsel %vm68, %v33, -inf
    %v77 = vrot.slane %v76, 4
    %v78 = vmax.f32 %v76, %v77
    %v79 = vrot.slane %v78, 2
    %v80 = vmax.f32 %v78, %v79
    %v81 = vrot.slane %v80, 1
    %v82 = vmax.f32 %v80, %v81
    %v83 = vsub.f32 %v32, %v75
    %v84 = vsub.f32 %v33, %v82
    %v85 = vmul.f32 %v83, 1.442695
    %v86 = vpow.pop %v85
    %v87 = vmul.f32 %v84, 1.442695
    %v88 = vpow.pop %v87
    %v89 = vsel %vm68, %v86, 0.0
    %v90 = vrot.slane %v89, 4
    %v91 = vadd.f32 %v89, %v90
    %v92 = vrot.slane %v91, 2
    %v93 = vadd.f32 %v91, %v92
    %v94 = vrot.slane %v93, 1
    %v95 = vadd.f32 %v93, %v94
    %v96 = vsel %vm68, %v88, 0.0
    %v97 = vrot.slane %v96, 4
    %v98 = vadd.f32 %v96, %v97
    %v99 = vrot.slane %v98, 2
    %v100 = vadd.f32 %v98, %v99
    %v101 = vrot.slane %v100, 1
    %v102 = vadd.f32 %v100, %v101
    %v103 = vlog2.pop %v95
    %v104 = vmul.f32 %v103, 0.6931472
    %v105 = vlog2.pop %v102
    %v106 = vmul.f32 %v105, 0.6931472
    %v107 = vadd.f32 %v104, %v75
    %v108 = vadd.f32 %v106, %v82
    %v109 = vmul.f32 %v66, %v32
    %v110 = vmul.f32 %v67, %v33
    %v111 = vsel %vm68, %v109, 0.0
    %v112 = vrot.slane %v111, 4
    %v113 = vadd.f32 %v111, %v112
    %v114 = vrot.slane %v113, 2
    %v115 = vadd.f32 %v113, %v114
    %v116 = vrot.slane %v115, 1
    %v117 = vadd.f32 %v115, %v116
    %v118 = vsel %vm68, %v110, 0.0
    %v119 = vrot.slane %v118, 4
    %v120 = vadd.f32 %v118, %v119
    %v121 = vrot.slane %v120, 2
    %v122 = vadd.f32 %v120, %v121
    %v123 = vrot.slane %v122, 1
    %v124 = vadd.f32 %v122, %v123
    %v125 = vsub.f32 %v107, %v117
    %v126 = vsub.f32 %v108, %v124
    %v127 = vmul.f32 %v125, %v59
    %v128 = vmul.f32 %v126, %v63
    %vm129 = vcmp.eq.f32.partialorder %v32, %v75
    %vm130 = vcmp.eq.f32.partialorder %v33, %v82
    %v131 = vsel %vm129, %v40, 5
    %v132 = vsel %vm130, %v40, 5
    %v133 = vsel %vm68, %v131, 2147483647
    %v134 = vrot.slane %v133, 4
    %vm135 = vcmp.lt.s32.totalorder %v133, %v134
    %v136 = vsel %vm135, %v133, %v134
    %v137 = vrot.slane %v136, 2
    %vm138 = vcmp.lt.s32.totalorder %v136, %v137
    %v139 = vsel %vm138, %v136, %v137
    %v140 = vrot.slane %v139, 1
    %vm141 = vcmp.lt.s32.totalorder %v139, %v140
    %v142 = vsel %vm141, %v139, %v140
    %v143 = vsel %vm68, %v132, 2147483647
    %v144 = vrot.slane %v143, 4
    %vm145 = vcmp.lt.s32.totalorder %v143, %v144
    %v146 = vsel %vm145, %v143, %v144
    %v147 = vrot.slane %v146, 2
    %vm148 = vcmp.lt.s32.totalorder %v146, %v147
    %v149 = vsel %vm148, %v146, %v147
    %v150 = vrot.slane %v149, 1
    %vm151 = vcmp.lt.s32.totalorder %v149, %v150
    %v152 = vsel %vm151, %v149, %v150
    %vm153 = vcmp.eq.s32.totalorder %v142, %v44
    %vm154 = vcmp.eq.s32.totalorder %v152, %v48
    %v155 = vsel %vm153, 1, 0
    %v156 = vsel %vm154, 1, 0
    %v157 = vcvt.s32.f32 %v155
    %v158 = vcvt.s32.f32 %v156
    %v159 = vmul.f32 %v157, %v59
    %v160 = vmul.f32 %v158, %v63
    %v161 = vld [vmem:[#allocation2] sm:$0x1f]
    %v162 = vlaneseq
    %v163 = vshrl.u32 %v162, 7
    %v164 = vsub.s32 0, %v163
    %v165 = vrot.slane %v159, %v164
    %v166 = vlaneseq
    %v167 = vshrl.u32 %v166, 7
    %v168 = vsub.s32 0, %v167
    %v169 = vrot.slane %v160, %v168
    %v170 = vmul.f32 %v66, %v165
    %v171 = vmul.f32 %v67, %v169
    %v172 = vsel %vm68, %v170, 0.0
    %v173 = vsel %vm68, %v171, 0.0
    %v174 = vadd.f32 %v172, %v173
    %175 = vadd.xlane.f32.xlu0 %v174
    %v176 = vpop.xlane.xlu0 %175
    %v177 = vadd.f32 %v161, %v176
    %vm178 = vcmask 4096
    %179 = vst.msk [vmem:[#allocation2] sm:$0x1f] %vm178, %v177
    %v180 = vld [vmem:[#allocation3] sm:$0x1f]
    %v181 = vsel %vm68, %v66, 0.0
    %v182 = vsel %vm68, %v67, 0.0
    %v183 = vadd.f32 %v181, %v182
    %184 = vadd.xlane.f32.xlu0 %v183
    %v185 = vpop.xlane.xlu0 %184
    %v186 = vadd.f32 %v180, %v185
    %187 = vst.msk [vmem:[#allocation3] sm:$0x1f] %vm178, %v186
    %v188 = vld [vmem:[#allocation4] sm:$0x1f]
    %v189 = vlaneseq
    %v190 = vshrl.u32 %v189, 7
    %v191 = vsub.s32 0, %v190
    %v192 = vrot.slane %v127, %v191
    %v193 = vlaneseq
    %v194 = vshrl.u32 %v193, 7
    %v195 = vsub.s32 0, %v194
    %v196 = vrot.slane %v128, %v195
    %v197 = vmul.f32 %v66, %v192
    %v198 = vmul.f32 %v67, %v196
    %v199 = vsel %vm68, %v197, 0.0
    %v200 = vsel %vm68, %v198, 0.0
    %v201 = vadd.f32 %v199, %v200
    %202 = vadd.xlane.f32.xlu0 %v201
    %v203 = vpop.xlane.xlu0 %202
    %v204 = vadd.f32 %v188, %v203
    %205 = vst.msk [vmem:[#allocation4] sm:$0x1f] %vm178, %v204
    // Predicated region
    $region18: #{tpu_custom_call.1} parent=1 // pred_check
      %p206 = pneg %p24
    $region19: #{tpu_custom_call.1} parent=1 // pred_check_branch
      %208 = sbr.rel (%p206) target = $region21
    $region20: #{tpu_custom_call.1} parent=1 // pred_region
      %v209 = vld [vmem:[#allocation2] sm:$0x1f]
      %v210 = vld [vmem:[#allocation3] sm:$0x1f]
      %vm211 = vcmp.gt.f32.partialorder %v210, 0.0
      %v212 = vmax.f32 %v210, 1.0
      %v213 = vrcp.pop %v212
      %v214 = vmul.f32 %v209, %v213
      %v215 = vsel %vm211, %v214, 0.0
      %v216 = vsub.f32 1.0, %v215
      %v217 = vld [vmem:[#allocation4] sm:$0x1f]
      %v218 = vmul.f32 %v216, %v217
      %v219 = vsel %vm178, %v218, 0.0
      %220 = vadd.xlane.f32.xlu0 %v219
      %v221 = vpop.xlane.xlu0 %220
      %v222 = vrot.slane %v221, 4
      %v223 = vadd.f32 %v221, %v222
      %v224 = vrot.slane %v223, 2
      %v225 = vadd.f32 %v223, %v224
      %v226 = vrot.slane %v225, 1
      %v227 = vadd.f32 %v225, %v226
      %s228 = vtos %v227
      %v229 = vstv %s228
      %v230 = vrcp.pop 200.0
      %v231 = vmul.f32 %v229, %v230
      %vm232 = vcmask 0
      %233 = vst.msk [vmem:[#allocation8] sm:$0x1] %vm232, %v231
    $region21: #{tpu_custom_call.1} parent=1 // pred_fallthru
      _
    // Predicated region
    $region22: #{tpu_custom_call.1} parent=1 // pred_check
      _
    $region23: #{tpu_custom_call.1} parent=1 // pred_check_branch
      %235 = sbr.rel (0) target = $region25
    $region24: #{tpu_custom_call.1} parent=1 // pred_region
      %s237 = ssub.s32 16, 16
      %238 = vsyncadd [#allocation7], %s237
      %s240 = sshll.u32 [#allocation8], 4
      %s241 = int_to_ptr.vmem [resolvable:$true] %s240
      %243 = dma.vmem_to_hbm [thread:$0]  %s241, 16, %s2, [#allocation7]
    $region25: #{tpu_custom_call.1} parent=1 // pred_fallthru
      _
    // Predicated region
    $region26: #{tpu_custom_call.1} parent=1 // pred_check
      _
    $region27: #{tpu_custom_call.1} parent=1 // pred_check_branch
      %245 = sbr.rel (0) target = $region29
    $region28: #{tpu_custom_call.1} parent=1 // pred_region
      %246 = dma.done [#allocation7], 16
    $region29: #{tpu_custom_call.1} parent=1 // pred_fallthru
      _
    %247 = vsyncpa [#allocation6], 1
    %248 = vsyncpa [#allocation7], 1

</llo_original>
